<compile_context>
chip_gen: v7x
topology: tpu7x:2x2x1
jax: 0.10.0
libtpu: 0.0.40
codegen_flags: <defaults>
</compile_context>

<pallas_src>
import math

import jax
import jax.numpy as jnp
from jax.experimental import pallas as pl
from jax.experimental.pallas import tpu as pltpu


# ----------------------------------------------------------------------------
# Fused Pallas kernel: TemplateBank.forward + conv2d, `bb` images per grid step.
# ----------------------------------------------------------------------------
def _sconv_kernel(xcol_ref, tpl_ref, csel_ref, o_ref):
    """Refs:
      xcol_ref : (bb, Kpad, oh*ow)     bf16  im2col slab, column j = p*Cin + c (zero-padded taps)
      tpl_ref  : (Cout, T*PPpad)       f32   un-broadcast templates, tplL[o, t*PPpad+p] = tpl[t,o,p]
      csel_ref : (T*PPpad, Kpad)       f32   coef_sel[t*PPpad+p', q*Cin+c] = coef[t,c] * (p'==q)
      o_ref    : (bb, Cout, oh*ow)     NCHW output with flattened spatial dims
    """
    # --- TemplateBank.forward, fused: (templates * coefficients).sum(0) -------------
    # One tiny 2-D MXU dot yields w[o, p*Cin + c] = sum_t tpl[t,o,p] * coef[t,c]
    # directly in im2col column order (padded tap columns come out exactly zero).
    w = jnp.dot(tpl_ref[...], csel_ref[...], preferred_element_type=jnp.float32)
    w = w.astype(jnp.bfloat16)                                   # (Cout, Kpad)

    # --- conv2d: one lane-dense MXU matmul per image in the batch block -------------
    # The synthesized weight is reused across the whole block (amortized per step).
    bb = o_ref.shape[0]
    for i in range(bb):                                          # static -> unrolled
        o_ref[i] = jnp.dot(
            w, xcol_ref[i], preferred_element_type=jnp.float32
        ).astype(o_ref.dtype)


def _pick_batch_block(n, max_b=8):
    """Images per grid step: keep >= 2 'parallel' steps (v7x has 2 TCs), batch up to 8."""
    if n <= 2:
        return 1
    for b in range(min(max_b, n // 2), 0, -1):
        if n % b == 0:
            return b
    return 1


# ----------------------------------------------------------------------------
# Wrapper: NCHW in / NCHW out.
# ----------------------------------------------------------------------------
def sconv2d_forward(x, templates, coefficients, stride=1, padding=1, out_dtype=None):
    """SConv2d forward (template-bank weight synthesis + conv2d)."""
    N, Cin, H, W = x.shape
    T, Cout, one, KH, KW = templates.shape
    assert one == 1, "TemplateBank templates carry a singleton input-channel dim"
    out_dtype = x.dtype if out_dtype is None else out_dtype

    oh = (H + 2 * padding - KH) // stride + 1
    ow = (W + 2 * padding - KW) // stride + 1
    S = oh * ow
    PP = KH * KW
    # Pad the tap axis so Kpad = PPpad*Cin is a multiple of 16 (full bf16 sublane groups).
    step = 16 // math.gcd(Cin, 16)
    PPpad = ((PP + step - 1) // step) * step
    Kpad = PPpad * Cin

    # --- im2col slab (bf16 halves the input DMA bytes) ------------------------------
    # Column j = p*Cin + c with p = kh*KW + kw; taps p >= PP are zero padding.
    # NOTE: at large H/W/Cin this KH*KW-fold slab should move in-kernel (halo BlockSpecs
    # / shifted slices) to keep kernel HBM traffic ~= raw input size (worst on v5e).
    xp = jnp.pad(x.astype(jnp.bfloat16),
                 ((0, 0), (0, 0), (padding, padding), (padding, padding)))
    cols = []
    for kh in range(KH):
        for kw in range(KW):
            cols.append(xp[:, :,
                           kh: kh + (oh - 1) * stride + 1: stride,
                           kw: kw + (ow - 1) * stride + 1: stride])
    for _ in range(PPpad - PP):
        cols.append(jnp.zeros_like(cols[0]))
    xcols = jnp.stack(cols, axis=1).reshape(N, Kpad, S)

    # --- un-broadcast bank parameters (no T*Cout*Cin slab) ---------------------------
    # tplL[o, t*PPpad + p] = templates[t, o, 0, kh, kw]  (zero for padded taps)
    tpl3 = templates.reshape(T, Cout, PP).astype(jnp.float32)
    tpl3 = jnp.pad(tpl3, ((0, 0), (0, 0), (0, PPpad - PP)))
    tplL = jnp.transpose(tpl3, (1, 0, 2)).reshape(Cout, T * PPpad)
    # coef_sel[t*PPpad + p', q*Cin + c] = coefficients[t, 0, c, 0, 0] * (p' == q)
    coef2 = coefficients.reshape(T, Cin).astype(jnp.float32)
    eye_p = jnp.eye(PPpad, dtype=jnp.float32)
    coef_sel = jnp.einsum("tc,pq->tpqc", coef2, eye_p).reshape(T * PPpad, Kpad)

    # --- grid / VMEM budget -----------------------------------------------------------
    bb = _pick_batch_block(N)
    assert N % bb == 0
    grid = (N // bb,)
    out_itemsize = jnp.dtype(out_dtype).itemsize
    est_vmem = 2 * (bb * Kpad * S * 2            # xcols block (bf16), double-buffered
                    + bb * Cout * S * out_itemsize
                    + Cout * T * PPpad * 4
                    + T * PPpad * Kpad * 4)
    vmem_limit = int(est_vmem + (8 << 20))       # generous headroom, well under v7x 64 MiB

    out_flat = pl.pallas_call(
        _sconv_kernel,
        out_shape=jax.ShapeDtypeStruct((N, Cout, S), out_dtype),
        grid=grid,
        in_specs=[
            pl.BlockSpec((bb, Kpad, S), lambda n: (n, 0, 0)),
            pl.BlockSpec((Cout, T * PPpad), lambda n: (0, 0)),
            pl.BlockSpec((T * PPpad, Kpad), lambda n: (0, 0)),
        ],
        out_specs=pl.BlockSpec((bb, Cout, S), lambda n: (n, 0, 0)),
        compiler_params=pltpu.CompilerParams(
            dimension_semantics=("parallel",),
            vmem_limit_bytes=vmem_limit,
        ),
    )(xcols, tplL, coef_sel)

    # Output is already NCHW; this is a free contiguous reshape, not a transpose.
    return out_flat.reshape(N, Cout, oh, ow)


# ----------------------------------------------------------------------------
# Deterministic parameter init (mimics torch.nn.init.orthogonal_ on the stacked
# templates, flattened to (T, Cout*KH*KW)) and a pure-JAX reference.
# ----------------------------------------------------------------------------
def orthogonal_init(key, rows, cols, dtype=jnp.float32):
    a = jax.random.normal(key, (max(rows, cols), min(rows, cols)), dtype)
    q, r = jnp.linalg.qr(a)
    q = q * jnp.sign(jnp.diagonal(r))
    if rows < cols:
        q = q.T
    return q[:rows, :cols].astype(dtype)


def reference_forward(x, templates, coefficients, stride=1, padding=1):
    # TemplateBank.forward: (templates * coefficients).sum(0) -> (Cout, Cin, KH, KW)
    w = jnp.sum(templates * coefficients, axis=0)
    return jax.lax.conv_general_dilated(
        x, w,
        window_strides=(stride, stride),
        padding=[(padding, padding), (padding, padding)],
        dimension_numbers=("NCHW", "OIHW", "NCHW"),
    )


if __name__ == "__main__":
    # TemplateBank(num_templates=4, output_channels=8, kernel_size=3), consumed by
    # an SConv2d with 4 input channels on a batch of 4 16x16 feature maps
    # (batch of 4 exercises the batched-per-step path: bb=2, grid=(2,)).
    N, Cin, H, W = 4, 4, 16, 16
    Cout, KH, KW = 8, 3, 3
    T = 4
    stride, padding = 1, 1

    key = jax.random.PRNGKey(0)
    k_tpl, k_coef, k_x = jax.random.split(key, 3)

    x = jax.random.normal(k_x, (N, Cin, H, W), jnp.float32)
    # nn.init.orthogonal_ over the (T, Cout*1*KH*KW)-flattened templates.
    templates = orthogonal_init(k_tpl, T, Cout * KH * KW).reshape(T, Cout, 1, KH, KW)
    # SConv2d-style per-input-channel mixing coefficients (the forward() argument).
    coefficients = 0.5 * jax.random.normal(k_coef, (T, 1, Cin, 1, 1), jnp.float32)

    out = sconv2d_forward(x, templates, coefficients, stride=stride, padding=padding)
    out = jax.block_until_ready(out)

    ref = reference_forward(x, templates, coefficients, stride=stride, padding=padding)
    assert out.shape == ref.shape, (out.shape, ref.shape)
    max_err = float(jnp.max(jnp.abs(out - ref)))
    # bf16 MXU inputs with f32 accumulation -> tolerance loosened vs a pure-f32 path.
    assert jnp.allclose(out, ref, atol=3e-2, rtol=3e-2), max_err

    print("KERNEL_OK")
</pallas_src>

<mosaic_0001>
module attributes {stable_mosaic.version = 11 : i64} {
  func.func @_sconv_kernel(%arg0: i32, %arg1: memref<2x48x256xbf16, #tpu.memory_space<vmem>>, %arg2: memref<8x48xf32, #tpu.memory_space<vmem>>, %arg3: memref<48x48xf32, #tpu.memory_space<vmem>>, %arg4: memref<2x8x256xf32, #tpu.memory_space<vmem>>) attributes {dimension_semantics = [#tpu.dimension_semantics<parallel>], iteration_bounds = array<i64: 2>, scalar_prefetch = 0 : i64, scratch_operands = 0 : i64, tpu.core_type = #tpu.core_type<tc>, window_params = [{transform_indices = @transform_0, window_bounds = array<i64: 2, 48, 256>}, {pipeline_mode = #tpu.pipeline_mode<synchronous>, transform_indices = @transform_1, window_bounds = array<i64: 8, 48>}, {pipeline_mode = #tpu.pipeline_mode<synchronous>, transform_indices = @transform_2, window_bounds = array<i64: 48, 48>}, {transform_indices = @transform_3, window_bounds = array<i64: 2, 8, 256>}]} {
    %c0 = arith.constant 0 : index
    %c0_0 = arith.constant 0 : index
    %0 = vector.load %arg2[%c0, %c0_0] : memref<8x48xf32, #tpu.memory_space<vmem>>, vector<8x48xf32>
    %c0_1 = arith.constant 0 : index
    %c0_2 = arith.constant 0 : index
    %1 = vector.load %arg3[%c0_1, %c0_2] : memref<48x48xf32, #tpu.memory_space<vmem>>, vector<48x48xf32>
    %cst = arith.constant dense<0.000000e+00> : vector<8x48xf32>
    %2 = tpu.matmul %0, %1, %cst {dimension_numbers = #tpu.dot_dimension_numbers<[1], [0], [0], [1], [0, 0, 1, 1], [], []>} : vector<8x48xf32>, vector<48x48xf32>, vector<8x48xf32> -> vector<8x48xf32>
    %3 = arith.truncf %2 : vector<8x48xf32> to vector<8x48xbf16>
    %c0_3 = arith.constant 0 : index
    %c0_4 = arith.constant 0 : index
    %c0_5 = arith.constant 0 : index
    %4 = vector.load %arg1[%c0_3, %c0_4, %c0_5] : memref<2x48x256xbf16, #tpu.memory_space<vmem>>, vector<1x48x256xbf16>
    %5 = vector.shape_cast %4 : vector<1x48x256xbf16> to vector<48x256xbf16>
    %cst_6 = arith.constant dense<0.000000e+00> : vector<8x256xf32>
    %6 = tpu.matmul %3, %5, %cst_6 {dimension_numbers = #tpu.dot_dimension_numbers<[1], [0], [0], [1], [0, 0, 1, 1], [], []>} : vector<8x48xbf16>, vector<48x256xbf16>, vector<8x256xf32> -> vector<8x256xf32>
    %c0_7 = arith.constant 0 : index
    %c0_8 = arith.constant 0 : index
    %c0_9 = arith.constant 0 : index
    %7 = vector.load %arg4[%c0_7, %c0_8, %c0_9] : memref<2x8x256xf32, #tpu.memory_space<vmem>>, vector<1x8x256xf32>
    %8 = vector.shape_cast %7 : vector<1x8x256xf32> to vector<8x256xf32>
    %9 = vector.shape_cast %6 : vector<8x256xf32> to vector<1x8x256xf32>
    tpu.vector_store %arg4[%c0_7, %c0_8, %c0_9], %9 {strides = array<i32>} : memref<2x8x256xf32, #tpu.memory_space<vmem>>, vector<1x8x256xf32>,
    %c1 = arith.constant 1 : index
    %c0_10 = arith.constant 0 : index
    %c0_11 = arith.constant 0 : index
    %10 = vector.load %arg1[%c1, %c0_10, %c0_11] : memref<2x48x256xbf16, #tpu.memory_space<vmem>>, vector<1x48x256xbf16>
    %11 = vector.shape_cast %10 : vector<1x48x256xbf16> to vector<48x256xbf16>
    %cst_12 = arith.constant dense<0.000000e+00> : vector<8x256xf32>
    %12 = tpu.matmul %3, %11, %cst_12 {dimension_numbers = #tpu.dot_dimension_numbers<[1], [0], [0], [1], [0, 0, 1, 1], [], []>} : vector<8x48xbf16>, vector<48x256xbf16>, vector<8x256xf32> -> vector<8x256xf32>
    %c1_13 = arith.constant 1 : index
    %c0_14 = arith.constant 0 : index
    %c0_15 = arith.constant 0 : index
    %13 = vector.load %arg4[%c1_13, %c0_14, %c0_15] : memref<2x8x256xf32, #tpu.memory_space<vmem>>, vector<1x8x256xf32>
    %14 = vector.shape_cast %13 : vector<1x8x256xf32> to vector<8x256xf32>
    %15 = vector.shape_cast %12 : vector<8x256xf32> to vector<1x8x256xf32>
    tpu.vector_store %arg4[%c1_13, %c0_14, %c0_15], %15 {strides = array<i32>} : memref<2x8x256xf32, #tpu.memory_space<vmem>>, vector<1x8x256xf32>,
    return
  }
  func.func @transform_0(%arg0: i32) -> (i32, i32, i32) {
    %c0_i32 = arith.constant 0 : i32
    %c0_i32_0 = arith.constant 0 : i32
    %c0_i32_1 = arith.constant 0 : i32
    return %arg0, %c0_i32, %c0_i32_0 : i32, i32, i32
  }
  func.func @transform_1(%arg0: i32) -> (i32, i32) {
    %c0_i32 = arith.constant 0 : i32
    %c0_i32_0 = arith.constant 0 : i32
    %c0_i32_1 = arith.constant 0 : i32
    return %c0_i32, %c0_i32_0 : i32, i32
  }
  func.func @transform_2(%arg0: i32) -> (i32, i32) {
    %c0_i32 = arith.constant 0 : i32
    %c0_i32_0 = arith.constant 0 : i32
    %c0_i32_1 = arith.constant 0 : i32
    return %c0_i32, %c0_i32_0 : i32, i32
  }
  func.func @transform_3(%arg0: i32) -> (i32, i32, i32) {
    %c0_i32 = arith.constant 0 : i32
    %c0_i32_0 = arith.constant 0 : i32
    %c0_i32_1 = arith.constant 0 : i32
    return %arg0, %c0_i32, %c0_i32_0 : i32, i32, i32
  }
}

</mosaic_0001>

<llo_original>
// kernel: tpu_custom_call.1
$region0: #{tpu_custom_call.1}
  #allocation0 [shape = 'u32[]', space=smem, size = 0x4, offset = 0x4, fixed_abs, tag = 'smem constant byte address 0x4 - core index']
  #allocation1 [shape = 'u32[144,128]{1,0:T(1,128)}', space=vmem, size = 0x12000, scoped, tag = 'internal scratch']
  %s0 = inlined_call_operand.hbm [shape: bf16[4,48,256], index: 0, kind: input, shape index: {}]
  %s1 = inlined_call_operand.hbm [shape: f32[8,48], index: 1, kind: input, shape index: {}]
  %s2 = inlined_call_operand.hbm [shape: f32[48,48], index: 2, kind: input, shape index: {}]
  %s3 = inlined_call_operand.hbm [shape: f32[4,8,256], index: 3, kind: output, shape index: {}]
  %s4 = sld [smem:[#allocation0]]
  $region57: #{tpu_custom_call.1} parent=0
    _
  %s6 = ssub.s32 1, %s4
  %s7 = scalar_select 0, %s6, %s4
  $region1: #{tpu_custom_call.1} parent=0
    #allocation2 [shape = 'u8[98304]{0}', space=vmem, size = 0x18000, scoped, tag = 'input window, operand 0']
    #allocation3 [shape = 's32[2]{0}', space=sflag, size = 0x8, scoped, tag = 'scoped memory for tpu_custom_call.1']
    #allocation4 [shape = 's32[2]{0}', space=sflag, size = 0x8, scoped, tag = 'scoped memory for tpu_custom_call.1']
    #allocation5 [shape = 'u8[4096]{0}', space=vmem, size = 0x1000, scoped, tag = 'input window, operand 1, single buffered']
    #allocation6 [shape = 's32[1]{0}', space=sflag, size = 0x4, scoped, tag = 'scoped memory for tpu_custom_call.1']
    #allocation7 [shape = 'u8[24576]{0}', space=vmem, size = 0x6000, scoped, tag = 'input window, operand 2, single buffered']
    #allocation8 [shape = 'u8[32768]{0}', space=vmem, size = 0x8000, scoped, tag = 'output window, operand 0']
    %8 = vsyncpa [#allocation3], 0
    %s9 = scalar_lea.sflag [#allocation3], 1
    %10 = vsyncpa %s9, 0
    %11 = vsyncpa [#allocation6], 0
    %12 = vsyncpa [#allocation4], 0
    %s13 = scalar_lea.sflag [#allocation4], 1
    %14 = vsyncpa %s13, 0
    loop: start=0, step=1, limit=4
    $region2: #{tpu_custom_call.1} parent=1 // loop_pre_header
      _
    $region3: #{tpu_custom_call.1} parent=1 // loop_header
      %s16 = sphi 0, %s20
      %p17 = scmp.ge.s32.totalorder %s16, 4
      %s26 = sphi 0, %s28
      %s29 = sphi 0, %s26
      %s30 = sphi 0, %s29
      %s46 = sphi 0, %s30
      %s50 = sphi 0, %s50
      %s52 = sphi 0, %s50
      %s53 = sphi 0, %s52
      %s67 = sphi 0, %s53
      %s71 = sphi 0, %s71
      %s73 = sphi 0, %s71
      %s74 = sphi 0, %s73
      %s88 = sphi 0, %s74
      %s94 = sphi 0, %s96
      %s97 = sphi 0, %s94
      %s98 = sphi 0, %s97
      %s114 = sphi 0, %s98
    $region4: #{tpu_custom_call.1} parent=1 // loop_header_branch
      %19 = sbr.rel (%p17) target = $region8
    $region5: #{tpu_custom_call.1} parent=1 // loop_body
      %s21 = ssub.s32 %s16, 1
      %s22 = ssub.s32 %s16, 2
      %s23 = sadd.s32 %s16, 1
      %s24 = ssub.s32 %s16, %s23
      %p25 = scmp.eq.s32.totalorder %s24, 0
      %s27 = sadd.s32 %s26, 1
      %s28 = scalar_select %p25, %s26, %s27
      %p31 = pneg %p25
      %p32 = scmp.eq.s32.totalorder %s16, 1
      %p33 = por %p31, %p32
      %p34 = scmp.ne.s32.totalorder %s26, %s29
      %p35 = scmp.eq.s32.totalorder %s16, 0
      %p36 = por %p34, %p35
      %p37 = scmp.ne.s32.totalorder %s26, %s29
      %p38 = scmp.eq.s32.totalorder %s21, 1
      %p39 = por %p37, %p38
      %p40 = scmp.ne.s32.totalorder %s29, %s30
      %p41 = scmp.eq.s32.totalorder %s21, 0
      %p42 = por %p40, %p41
      %p43 = scmp.ne.s32.totalorder %s29, %s30
      %p44 = scmp.eq.s32.totalorder %s22, 1
      %p45 = por %p43, %p44
      %p47 = scmp.ne.s32.totalorder %s30, %s46
      %p48 = scmp.eq.s32.totalorder %s22, 0
      %p49 = por %p47, %p48
      %s51 = sadd.s32 %s50, 1
      %p54 = scmp.eq.s32.totalorder %s16, 1
      %p55 = scmp.ne.s32.totalorder %s50, %s52
      %p56 = scmp.eq.s32.totalorder %s16, 0
      %p57 = por %p55, %p56
      %p58 = scmp.ne.s32.totalorder %s50, %s52
      %p59 = scmp.eq.s32.totalorder %s21, 1
      %p60 = por %p58, %p59
      %p61 = scmp.ne.s32.totalorder %s52, %s53
      %p62 = scmp.eq.s32.totalorder %s21, 0
      %p63 = por %p61, %p62
      %p64 = scmp.ne.s32.totalorder %s52, %s53
      %p65 = scmp.eq.s32.totalorder %s22, 1
      %p66 = por %p64, %p65
      %p68 = scmp.ne.s32.totalorder %s53, %s67
      %p69 = scmp.eq.s32.totalorder %s22, 0
      %p70 = por %p68, %p69
      %s72 = sadd.s32 %s71, 1
      %p75 = scmp.eq.s32.totalorder %s16, 1
      %p76 = scmp.ne.s32.totalorder %s71, %s73
      %p77 = scmp.eq.s32.totalorder %s16, 0
      %p78 = por %p76, %p77
      %p79 = scmp.ne.s32.totalorder %s71, %s73
      %p80 = scmp.eq.s32.totalorder %s21, 1
      %p81 = por %p79, %p80
      %p82 = scmp.ne.s32.totalorder %s73, %s74
      %p83 = scmp.eq.s32.totalorder %s21, 0
      %p84 = por %p82, %p83
      %p85 = scmp.ne.s32.totalorder %s73, %s74
      %p86 = scmp.eq.s32.totalorder %s22, 1
      %p87 = por %p85, %p86
      %p89 = scmp.ne.s32.totalorder %s74, %s88
      %p90 = scmp.eq.s32.totalorder %s22, 0
      %p91 = por %p89, %p90
      %s92 = ssub.s32 %s16, %s23
      %p93 = scmp.eq.s32.totalorder %s92, 0
      %s95 = sadd.s32 %s94, 1
      %s96 = scalar_select %p93, %s94, %s95
      %p99 = pneg %p93
      %p100 = scmp.eq.s32.totalorder %s16, 1
      %p101 = por %p99, %p100
      %p102 = scmp.ne.s32.totalorder %s94, %s97
      %p103 = scmp.eq.s32.totalorder %s16, 0
      %p104 = por %p102, %p103
      %p105 = scmp.ne.s32.totalorder %s94, %s97
      %p106 = scmp.eq.s32.totalorder %s21, 1
      %p107 = por %p105, %p106
      %p108 = scmp.ne.s32.totalorder %s97, %s98
      %p109 = scmp.eq.s32.totalorder %s21, 0
      %p110 = por %p108, %p109
      %p111 = scmp.ne.s32.totalorder %s97, %s98
      %p112 = scmp.eq.s32.totalorder %s22, 1
      %p113 = por %p111, %p112
      %p115 = scmp.ne.s32.totalorder %s98, %s114
      %p116 = scmp.eq.s32.totalorder %s22, 0
      %p117 = por %p115, %p116
      %p118 = scmp.le.s32.totalorder 1, %s16
      %p119 = scmp.lt.s32.totalorder %s16, 3
      %p120 = pnand %p118, %p119
      %p121 = pneg %p120
      // Predicated region
      $region9: #{tpu_custom_call.1} parent=5 // pred_check
        _
      $region10: #{tpu_custom_call.1} parent=5 // pred_check_branch
        %123 = sbr.rel (%p120) target = $region12
      $region11: #{tpu_custom_call.1} parent=5 // pred_region
        %s124 = ssub.s32 %s16, 1
        // Predicated region
        $region13: #{tpu_custom_call.1} parent=11 // pred_check
          %p125 = pneg %p63
        $region14: #{tpu_custom_call.1} parent=11 // pred_check_branch
          %127 = sbr.rel (%p125) target = $region16
        $region15: #{tpu_custom_call.1} parent=11 // pred_region
          %s129 = ssub.s32 128, 128
          %130 = vsyncadd [#allocation6], %s129
          %s132 = sshll.u32 [#allocation5], 4
          %s133 = int_to_ptr.vmem [resolvable:$true] %s132
          %135 = dma.hbm_to_vmem [thread:$0]  %s1, 128, %s133, [#allocation6]
        $region16: #{tpu_custom_call.1} parent=11 // pred_fallthru
          _
        // Predicated region
        $region17: #{tpu_custom_call.1} parent=11 // pred_check
          %p136 = pneg %p84
        $region18: #{tpu_custom_call.1} parent=11 // pred_check_branch
          %138 = sbr.rel (%p136) target = $region20
        $region19: #{tpu_custom_call.1} parent=11 // pred_region
          %s140 = ssub.s32 768, 768
          %141 = vsyncadd [#allocation6], %s140
          %s142 = sshll.u32 [#allocation7], 4
          %s143 = int_to_ptr.vmem [resolvable:$true] %s142
          %148 = dma.hbm_to_vmem [thread:$0]  %s2, 768, %s143, [#allocation6], 128, 128, 8
        $region20: #{tpu_custom_call.1} parent=11 // pred_fallthru
          _
      $region12: #{tpu_custom_call.1} parent=5 // pred_fallthru
        _
      %p149 = scmp.lt.s32.totalorder %s16, 2
      // Predicated region
      $region21: #{tpu_custom_call.1} parent=5 // pred_check
        %p150 = pneg %p149
      $region22: #{tpu_custom_call.1} parent=5 // pred_check_branch
        %152 = sbr.rel (%p150) target = $region24
      $region23: #{tpu_custom_call.1} parent=5 // pred_region
        // Predicated region
        $region25: #{tpu_custom_call.1} parent=23 // pred_check
          %p153 = pneg %p36
        $region26: #{tpu_custom_call.1} parent=23 // pred_check_branch
          %155 = sbr.rel (%p153) target = $region28
        $region27: #{tpu_custom_call.1} parent=23 // pred_region
          %s156 = sand.u32 %s26, 1
          %s157 = scalar_lea.sflag [#allocation3], %s156
          %s158 = sand.u32 %s26, 1
          %s159 = smul.addr %s158, 96
          %s160 = scalar_lea.vmem [#allocation2], %s159
          %s161 = smul.u32 2, %s16
          %s163 = ssub.s32 1536, 1536
          %164 = vsyncadd %s157, %s163
          %s165 = smul.addr %s161, 12
          %s166 = smul.addr %s165, 64
          %s167 = scalar_lea.hbm %s0, %s166
          %s168 = sshll.u32 %s160, 4
          %s169 = int_to_ptr.vmem [resolvable:$true] %s168
          %174 = dma.hbm_to_vmem [thread:$0]  %s167, 1536, %s169, %s157, 128, 128, 8
        $region28: #{tpu_custom_call.1} parent=23 // pred_fallthru
          _
      $region24: #{tpu_custom_call.1} parent=5 // pred_fallthru
        _
      %p175 = scmp.le.s32.totalorder 1, %s16
      %p176 = scmp.lt.s32.totalorder %s16, 3
      %p177 = pnand %p175, %p176
      %p178 = pneg %p177
      // Predicated region
      $region29: #{tpu_custom_call.1} parent=5 // pred_check
        _
      $region30: #{tpu_custom_call.1} parent=5 // pred_check_branch
        %180 = sbr.rel (%p177) target = $region32
      $region31: #{tpu_custom_call.1} parent=5 // pred_region
        %s181 = ssub.s32 %s16, 1
        %s182 = sand.u32 %s29, 1
        %s183 = scalar_lea.sflag [#allocation3], %s182
        %s184 = sand.u32 %s29, 1
        %s185 = smul.addr %s184, 96
        %s186 = scalar_lea.vmem [#allocation2], %s185
        // Predicated region
        $region33: #{tpu_custom_call.1} parent=31 // pred_check
          %p187 = pneg %p42
        $region34: #{tpu_custom_call.1} parent=31 // pred_check_branch
          %189 = sbr.rel (%p187) target = $region36
        $region35: #{tpu_custom_call.1} parent=31 // pred_region
          %190 = dma.done %s183, 1536
        $region36: #{tpu_custom_call.1} parent=31 // pred_fallthru
          _
        // Predicated region
        $region37: #{tpu_custom_call.1} parent=31 // pred_check
          %p191 = pneg %p63
        $region38: #{tpu_custom_call.1} parent=31 // pred_check_branch
          %193 = sbr.rel (%p191) target = $region40
        $region39: #{tpu_custom_call.1} parent=31 // pred_region
          %194 = dma.done [#allocation6], 128
        $region40: #{tpu_custom_call.1} parent=31 // pred_fallthru
          _
        // Predicated region
        $region41: #{tpu_custom_call.1} parent=31 // pred_check
          %p195 = pneg %p84
        $region42: #{tpu_custom_call.1} parent=31 // pred_check_branch
          %197 = sbr.rel (%p195) target = $region44
        $region43: #{tpu_custom_call.1} parent=31 // pred_region
          %198 = dma.done [#allocation6], 768
        $region44: #{tpu_custom_call.1} parent=31 // pred_fallthru
          _
        %s199 = sand.u32 %s29, 1
        %s200 = scalar_lea.sflag [#allocation3], %s199
        %s201 = sand.u32 %s29, 1
        %s202 = smul.addr %s201, 96
        %s203 = scalar_lea.vmem [#allocation2], %s202
        %p204 = pneg %p42
        %p205 = pneg %p39
        %p206 = pneg %p63
        %p207 = pneg %p60
        %p208 = pneg %p84
        %p209 = pneg %p81
        %p210 = pneg %p110
        %p211 = pneg %p107
        %s212 = sand.u32 %s97, 1
        %s213 = scalar_lea.sflag [#allocation4], %s212
        %s214 = sand.u32 %s97, 1
        %s215 = smul.addr %s214, 32
        %s216 = scalar_lea.vmem [#allocation8], %s215
        %s217 = smul.u32 2, %s21
        %s218 = smul.u32 2, %s21
        %v220 = vld [vmem:[#allocation5] sm:$0xff]
        %v221 = vld [vmem:[#allocation7] sm:$0xff]
        %v222 = vld [vmem:[#allocation7 + $0x8] sm:$0xff]
        %v223 = vld [vmem:[#allocation7 + $0x10] sm:$0xff]
        %v224 = vld [vmem:[#allocation7 + $0x18] sm:$0xff]
        %v225 = vld [vmem:[#allocation7 + $0x20] sm:$0xff]
        %v226 = vld [vmem:[#allocation7 + $0x28] sm:$0xff]
        %vm227 = vcmask 392192
        %v229 = vsel %vm227, %v220, 0
        %231 = vmatprep.subr.mxu0 0.0
        %232 = vmatpush1.msra.mxu0 %v221
        %233 = vmatprep.subr.mxu0 0.0
        %234 = vmatpush1.msra.mxu0 %v222
        %235 = vmatprep.subr.mxu0 0.0
        %236 = vmatpush1.msra.mxu0 %v223
        %237 = vmatprep.subr.mxu0 0.0
        %238 = vmatpush1.msra.mxu0 %v224
        %239 = vmatprep.subr.mxu0 0.0
        %240 = vmatpush1.msra.mxu0 %v225
        %241 = vmatprep.subr.mxu0 0.0
        %242 = vmatpush1.msra.mxu0 %v226
        %243 = vmatprep.subr.mxu0 0.0
        %244 = vmatpush1.msra.mxu0 0.0
        %245 = vmatprep.subr.mxu0 0.0
        %246 = vmatpush1.msra.mxu0 0.0
        %247 = vmatprep.subr.mxu0 0.0
        %248 = vmatpush1.msra.mxu0 0.0
        %249 = vmatprep.subr.mxu0 0.0
        %250 = vmatpush1.msra.mxu0 0.0
        %251 = vmatprep.subr.mxu0 0.0
        %252 = vmatpush1.msra.mxu0 0.0
        %253 = vmatprep.subr.mxu0 0.0
        %254 = vmatpush1.msra.mxu0 0.0
        %255 = vmatprep.subr.mxu0 0.0
        %256 = vmatpush1.msra.mxu0 0.0
        %257 = vmatprep.subr.mxu0 0.0
        %258 = vmatpush1.msra.mxu0 0.0
        %259 = vmatprep.subr.mxu0 0.0
        %260 = vmatpush1.msra.mxu0 0.0
        %261 = vmatprep.subr.mxu0 0.0
        %262 = vmatpush1.msra.mxu0 0.0
        %263 = vmatprep.subr.mxu0 0.0
        %264 = vmatpush1.msra.mxu0 0.0
        %265 = vmatprep.subr.mxu0 0.0
        %266 = vmatpush1.msra.mxu0 0.0
        %267 = vmatprep.subr.mxu0 0.0
        %268 = vmatpush1.msra.mxu0 0.0
        %269 = vmatprep.subr.mxu0 0.0
        %270 = vmatpush1.msra.mxu0 0.0
        %271 = vmatprep.subr.mxu0 0.0
        %272 = vmatpush1.msra.mxu0 0.0
        %273 = vmatprep.subr.mxu0 0.0
        %274 = vmatpush1.msra.mxu0 0.0
        %275 = vmatprep.subr.mxu0 0.0
        %276 = vmatpush1.msra.mxu0 0.0
        %277 = vmatprep.subr.mxu0 0.0
        %278 = vmatpush1.msra.mxu0 0.0
        %279 = vmatprep.subr.mxu0 0.0
        %280 = vmatpush1.msra.mxu0 0.0
        %281 = vmatprep.subr.mxu0 0.0
        %282 = vmatpush1.msra.mxu0 0.0
        %283 = vmatprep.subr.mxu0 0.0
        %284 = vmatpush1.msra.mxu0 0.0
        %285 = vmatprep.subr.mxu0 0.0
        %286 = vmatpush1.msra.mxu0 0.0
        %287 = vmatprep.subr.mxu0 0.0
        %288 = vmatpush1.msra.mxu0 0.0
        %289 = vmatprep.subr.mxu0 0.0
        %290 = vmatpush1.msra.mxu0 0.0
        %291 = vmatprep.subr.mxu0 0.0
        %292 = vmatpush1.msra.mxu0 0.0
        %293 = vmatprep.subr.mxu0 0.0
        %294 = vmatpush1.msra.mxu0 0.0
        %295 = vmatprep.mubr.f32.mxu0 0.0
        %296 = vmatmul.mubr.f32.gmra.mrb[0].mxu0 %v229
        %v297 = vpop.f32.mrb[0].mxu0
        %v298 = vadd.f32 0.0, %v297
        %v299 = vpop.f32.mrb[0].mxu0
        %300 = vdwg.mxu0
        %v301 = vpack.c.bf16 %v298, %v298
        %v302 = vld [vmem:[%s186] sm:$0xff]
        %v303 = vld [vmem:[%s186 + $0x8] sm:$0xff]
        %v304 = vld [vmem:[%s186 + $0x10] sm:$0xff]
        %v305 = vld [vmem:[%s186 + $0x18] sm:$0xff]
        %v306 = vld [vmem:[%s186 + $0x20] sm:$0xff]
        %v307 = vld [vmem:[%s186 + $0x28] sm:$0xff]
        %v314 = vunpack.c.l.b16 %v302
        %v315 = vunpack.c.h.b16 %v302
        %v316 = vunpack.c.l.b16 %v303
        %v317 = vunpack.c.h.b16 %v303
        %v318 = vunpack.c.l.b16 %v304
        %v319 = vunpack.c.h.b16 %v304
        %v320 = vunpack.c.l.b16 %v305
        %v321 = vunpack.c.h.b16 %v305
        %v322 = vunpack.c.l.b16 %v306
        %v323 = vunpack.c.h.b16 %v306
        %v324 = vunpack.c.l.b16 %v307
        %v325 = vunpack.c.h.b16 %v307
        %v326 = vpack.c.b16 %v316, %v314
        %v327 = vpack.c.b16 %v317, %v315
        %v328 = vpack.c.b16 %v320, %v318
        %v329 = vpack.c.b16 %v321, %v319
        %v330 = vpack.c.b16 %v324, %v322
        %v331 = vpack.c.b16 %v325, %v323
        %v339 = vsel %vm227, %v301, 0
        %341 = vmatprep.subr.bf16.mxu0 %v327
        %342 = vmatpush1.bf16.msra.mxu0 %v326
        %343 = vmatprep.subr.bf16.mxu0 %v329
        %344 = vmatpush1.bf16.msra.mxu0 %v328
        %345 = vmatprep.subr.bf16.mxu0 %v331
        %346 = vmatpush1.bf16.msra.mxu0 %v330
        %347 = vmatprep.subr.bf16.mxu0 0
        %348 = vmatpush1.bf16.msra.mxu0 0
        %349 = vmatprep.subr.bf16.mxu0 0
        %350 = vmatpush1.bf16.msra.mxu0 0
        %351 = vmatprep.subr.bf16.mxu0 0
        %352 = vmatpush1.bf16.msra.mxu0 0
        %353 = vmatprep.subr.bf16.mxu0 0
        %354 = vmatpush1.bf16.msra.mxu0 0
        %355 = vmatprep.subr.bf16.mxu0 0
        %356 = vmatpush1.bf16.msra.mxu0 0
        %357 = vmatprep.subr.bf16.mxu0 0
        %358 = vmatpush1.bf16.msra.mxu0 0
        %359 = vmatprep.subr.bf16.mxu0 0
        %360 = vmatpush1.bf16.msra.mxu0 0
        %361 = vmatprep.subr.bf16.mxu0 0
        %362 = vmatpush1.bf16.msra.mxu0 0
        %363 = vmatprep.subr.bf16.mxu0 0
        %364 = vmatpush1.bf16.msra.mxu0 0
        %365 = vmatprep.subr.bf16.mxu0 0
        %366 = vmatpush1.bf16.msra.mxu0 0
        %367 = vmatprep.subr.bf16.mxu0 0
        %368 = vmatpush1.bf16.msra.mxu0 0
        %369 = vmatprep.subr.bf16.mxu0 0
        %370 = vmatpush1.bf16.msra.mxu0 0
        %371 = vmatprep.subr.bf16.mxu0 0
        %372 = vmatpush1.bf16.msra.mxu0 0
        %373 = vmatprep.mubr.bf16.mxu0 0
        %374 = vmatmul.mubr.bf16.gmra.mrb[0].mxu0 %v339
        %v375 = vpop.f32.mrb[0].mxu0
        %v376 = vadd.f32 0.0, %v375
        %v377 = vpop.f32.mrb[0].mxu0
        %v378 = vadd.f32 0.0, %v377
        %v379 = vpop.f32.mrb[0].mxu0
        %v380 = vpop.f32.mrb[0].mxu0
        %381 = vdwg.mxu0
        %382 = vst [vmem:[%s216] sm:$0xff] %v376
        %383 = vst [vmem:[%s216 + $0x8] sm:$0xff] %v378
        %s384 = scalar_lea.vmem %s186, 48 [#allocation2]
        %v385 = vld [vmem:[%s384] sm:$0xff]
        %v386 = vld [vmem:[%s384 + $0x8] sm:$0xff]
        %v387 = vld [vmem:[%s384 + $0x10] sm:$0xff]
        %v388 = vld [vmem:[%s384 + $0x18] sm:$0xff]
        %v389 = vld [vmem:[%s384 + $0x20] sm:$0xff]
        %v390 = vld [vmem:[%s384 + $0x28] sm:$0xff]
        %v397 = vunpack.c.l.b16 %v385
        %v398 = vunpack.c.h.b16 %v385
        %v399 = vunpack.c.l.b16 %v386
        %v400 = vunpack.c.h.b16 %v386
        %v401 = vunpack.c.l.b16 %v387
        %v402 = vunpack.c.h.b16 %v387
        %v403 = vunpack.c.l.b16 %v388
        %v404 = vunpack.c.h.b16 %v388
        %v405 = vunpack.c.l.b16 %v389
        %v406 = vunpack.c.h.b16 %v389
        %v407 = vunpack.c.l.b16 %v390
        %v408 = vunpack.c.h.b16 %v390
        %v409 = vpack.c.b16 %v399, %v397
        %v410 = vpack.c.b16 %v400, %v398
        %v411 = vpack.c.b16 %v403, %v401
        %v412 = vpack.c.b16 %v404, %v402
        %v413 = vpack.c.b16 %v407, %v405
        %v414 = vpack.c.b16 %v408, %v406
        %421 = vmatprep.subr.bf16.mxu0 %v410
        %422 = vmatpush1.bf16.msra.mxu0 %v409
        %423 = vmatprep.subr.bf16.mxu0 %v412
        %424 = vmatpush1.bf16.msra.mxu0 %v411
        %425 = vmatprep.subr.bf16.mxu0 %v414
        %426 = vmatpush1.bf16.msra.mxu0 %v413
        %427 = vmatprep.subr.bf16.mxu0 0
        %428 = vmatpush1.bf16.msra.mxu0 0
        %429 = vmatprep.subr.bf16.mxu0 0
        %430 = vmatpush1.bf16.msra.mxu0 0
        %431 = vmatprep.subr.bf16.mxu0 0
        %432 = vmatpush1.bf16.msra.mxu0 0
        %433 = vmatprep.subr.bf16.mxu0 0
        %434 = vmatpush1.bf16.msra.mxu0 0
        %435 = vmatprep.subr.bf16.mxu0 0
        %436 = vmatpush1.bf16.msra.mxu0 0
        %437 = vmatprep.subr.bf16.mxu0 0
        %438 = vmatpush1.bf16.msra.mxu0 0
        %439 = vmatprep.subr.bf16.mxu0 0
        %440 = vmatpush1.bf16.msra.mxu0 0
        %441 = vmatprep.subr.bf16.mxu0 0
        %442 = vmatpush1.bf16.msra.mxu0 0
        %443 = vmatprep.subr.bf16.mxu0 0
        %444 = vmatpush1.bf16.msra.mxu0 0
        %445 = vmatprep.subr.bf16.mxu0 0
        %446 = vmatpush1.bf16.msra.mxu0 0
        %447 = vmatprep.subr.bf16.mxu0 0
        %448 = vmatpush1.bf16.msra.mxu0 0
        %449 = vmatprep.subr.bf16.mxu0 0
        %450 = vmatpush1.bf16.msra.mxu0 0
        %451 = vmatprep.subr.bf16.mxu0 0
        %452 = vmatpush1.bf16.msra.mxu0 0
        %453 = vmatprep.mubr.bf16.mxu0 0
        %454 = vmatmul.mubr.bf16.gmra.mrb[0].mxu0 %v339
        %v455 = vpop.f32.mrb[0].mxu0
        %v456 = vadd.f32 0.0, %v455
        %v457 = vpop.f32.mrb[0].mxu0
        %v458 = vadd.f32 0.0, %v457
        %v459 = vpop.f32.mrb[0].mxu0
        %v460 = vpop.f32.mrb[0].mxu0
        %461 = vdwg.mxu0
        %s462 = scalar_lea.vmem %s216, 16 [#allocation8]
        %463 = vst [vmem:[%s462] sm:$0xff] %v456
        %464 = vst [vmem:[%s462 + $0x8] sm:$0xff] %v458
        %s465 = sand.u32 %s97, 1
        %s466 = scalar_lea.sflag [#allocation4], %s465
        %s467 = sand.u32 %s97, 1
        %s468 = smul.addr %s467, 32
        %s469 = scalar_lea.vmem [#allocation8], %s468
        // Predicated region
        $region45: #{tpu_custom_call.1} parent=31 // pred_check
          %p470 = pneg %p107
        $region46: #{tpu_custom_call.1} parent=31 // pred_check_branch
          %472 = sbr.rel (%p470) target = $region48
        $region47: #{tpu_custom_call.1} parent=31 // pred_region
          %s473 = smul.u32 2, %s21
          %s475 = ssub.s32 512, 512
          %476 = vsyncadd %s466, %s475
          %s477 = smul.addr %s473, 2
          %s478 = smul.addr %s477, 128
          %s479 = scalar_lea.hbm %s3, %s478
          %s480 = sshll.u32 %s469, 4
          %s481 = int_to_ptr.vmem [resolvable:$true] %s480
          %486 = dma.vmem_to_hbm [thread:$0]  %s481, 512, %s479, %s466, 256, 256, 16
        $region48: #{tpu_custom_call.1} parent=31 // pred_fallthru
          _
      $region32: #{tpu_custom_call.1} parent=5 // pred_fallthru
        _
      %p487 = scmp.le.s32.totalorder 2, %s16
      // Predicated region
      $region49: #{tpu_custom_call.1} parent=5 // pred_check
        %p488 = pneg %p487
      $region50: #{tpu_custom_call.1} parent=5 // pred_check_branch
        %490 = sbr.rel (%p488) target = $region52
      $region51: #{tpu_custom_call.1} parent=5 // pred_region
        %s491 = ssub.s32 %s16, 2
        // Predicated region
        $region53: #{tpu_custom_call.1} parent=51 // pred_check
          %p492 = pneg %p113
        $region54: #{tpu_custom_call.1} parent=51 // pred_check_branch
          %494 = sbr.rel (%p492) target = $region56
        $region55: #{tpu_custom_call.1} parent=51 // pred_region
          %s495 = sand.u32 %s98, 1
          %s496 = scalar_lea.sflag [#allocation4], %s495
          %s497 = sand.u32 %s98, 1
          %s498 = smul.addr %s497, 32
          %s499 = scalar_lea.vmem [#allocation8], %s498
          %500 = dma.done %s496, 512
        $region56: #{tpu_custom_call.1} parent=51 // pred_fallthru
          _
      $region52: #{tpu_custom_call.1} parent=5 // pred_fallthru
        _
    $region6: #{tpu_custom_call.1} parent=1 // loop_footer
      %s20 = sadd.s32 1, %s16
    $region7: #{tpu_custom_call.1} parent=1 // loop_footer_branch
      %15 = sbr.rel target = $region3
    $region8: #{tpu_custom_call.1} parent=1 // loop_exit
      _
    %501 = vsyncpa [#allocation3], 1
    %s502 = scalar_lea.sflag [#allocation3], 1
    %503 = vsyncpa %s502, 1
    %504 = vsyncpa [#allocation6], 1
    %505 = vsyncpa [#allocation4], 1
    %s506 = scalar_lea.sflag [#allocation4], 1
    %507 = vsyncpa %s506, 1

</llo_original>
